<compile_context>
chip_gen: v7x
topology: tpu7x:2x2x1
jax: 0.10.0
libtpu: 0.0.40
codegen_flags: <defaults>
</compile_context>

<pallas_src>
import jax
import jax.numpy as jnp
from jax.experimental import pallas as pl
from jax.experimental.pallas import tpu as pltpu


def _round_up(x, m):
    return (x + m - 1) // m * m


# ----------------------------- Pallas kernel --------------------------------
def _encoder_head_kernel(x_ref, w_ref, b_ref, o_ref, acc_ref):
    """One (batch-tile, channel-chunk) step of AvgPool -> flatten -> Linear.

    x_ref  : (Bt, S, Ck)  feature-map tile (spatial on sublanes, channels on lanes)
    w_ref  : (Ck, Ep)     embed weight chunk, transposed, pre-scaled by 1/S
    b_ref  : (1, Ep)      embed bias (f32)
    o_ref  : (Bt, Ep)     output tile (written on the last channel chunk only)
    acc_ref: (Bt, Ep) f32 accumulator scratch (persists across channel chunks)
    """
    c = pl.program_id(1)

    @pl.when(c == 0)
    def _():
        acc_ref[...] = jnp.zeros_like(acc_ref)

    # Global average pool over the spatial axis, accumulated in f32 (XLU
    # cross-sublane sum).  The 1/S scale is already folded into the weight.
    pooled = jnp.sum(x_ref[...].astype(jnp.float32), axis=1)       # (Bt, Ck) f32
    pooled = pooled.astype(w_ref.dtype)                            # match MXU operand dtype

    # Partial Linear over this channel chunk; f32 accumulation on the MXU.
    acc_ref[...] += jnp.dot(pooled, w_ref[...],
                            preferred_element_type=jnp.float32)

    @pl.when(c == pl.num_programs(1) - 1)
    def _():
        # Ep is a multiple of 128 -> unmasked, lane-dense store.
        o_ref[...] = (acc_ref[...] + b_ref[...]).astype(o_ref.dtype)


# ------------------------------- wrapper -------------------------------------
def encoder_cnn_forward(feature_map_nhwc, w_embed, b_embed, *,
                        batch_tile_cap=128,
                        c_chunk_target=512,
                        vmem_budget_bytes=24 * 1024 * 1024):
    """EncoderCNN head: AdaptiveAvgPool2d((1,1)) -> flatten -> Linear.

    feature_map_nhwc: (B, H, W, C) f32 or bf16 backbone output in NHWC so the
                      reshape to (B, S, C) is free (no HBM transpose pass).
    w_embed: (E, C) PyTorch nn.Linear weight;  b_embed: (E,) bias.
    Returns (B, E) float32 embedded features.
    """
    B, H, W, C = feature_map_nhwc.shape
    E = w_embed.shape[0]
    S = H * W
    x_item = jnp.dtype(feature_map_nhwc.dtype).itemsize

    # ---- channel chunking (reduction grid axis, placed last / "arbitrary") ----
    Cp = _round_up(C, 128)
    if Cp <= c_chunk_target:
        Ck = Cp                                   # single chunk
    else:
        Ck = _round_up(c_chunk_target, 128)
        Cp = _round_up(Cp, Ck)
    n_c = Cp // Ck
    Ep = _round_up(E, 128)

    # ---- batch tile: as large as the VMEM budget / MXU rows allow ----
    rows_per_budget = max(8, (vmem_budget_bytes // (2 * S * Ck * x_item)) // 8 * 8)
    if B < 8:
        bt = B                                    # full (tiny) batch in one tile
    else:
        bt = min(batch_tile_cap, rows_per_budget, (B // 8) * 8)
        if pl.cdiv(B, bt) == 1 and B > 8:
            # prefer >= 2 batch tiles so "parallel" can shard across v7x's 2 TCs
            bt = min(bt, _round_up(pl.cdiv(B, 2), 8))
    n_b = pl.cdiv(B, bt)

    # ---- layout plumbing (free reshape; pad only when actually misaligned) ----
    x = feature_map_nhwc.reshape(B, S, C)
    if Cp != C:                                   # no-op for ResNet-50 (C = 2048)
        x = jnp.pad(x, ((0, 0), (0, 0), (0, Cp - C)))
    w_t = w_embed.astype(jnp.float32).T * (1.0 / S)          # fold 1/S into weight
    w_t = jnp.pad(w_t, ((0, Cp - C), (0, Ep - E))).astype(x.dtype)
    b = jnp.pad(b_embed.astype(jnp.float32), (0, Ep - E)).reshape(1, Ep)

    # ---- VMEM accounting -> explicit limit (v7x-safe defaults) ----
    vmem_est = (2 * bt * S * Ck * x_item                     # double-buffered x block
                + (bt * S * Ck * 4 if x_item < 4 else 0)     # in-kernel f32 upcast temp
                + 2 * Ck * Ep * x_item                       # double-buffered weight chunk
                + Ep * 4                                     # bias
                + 2 * bt * Ep * 4                            # double-buffered out block
                + bt * Ep * 4)                               # f32 accumulator scratch
    vmem_limit = int(min(128 * 1024 * 1024,
                         max(32 * 1024 * 1024, vmem_est + (4 << 20))))

    cost = pl.CostEstimate(
        flops=2 * B * S * Cp + 2 * B * Cp * Ep,
        transcendentals=0,
        bytes_accessed=int(x.size * x_item + w_t.size * x_item
                           + Ep * 4 + n_b * bt * Ep * 4),
    )

    out = pl.pallas_call(
        _encoder_head_kernel,
        out_shape=jax.ShapeDtypeStruct((n_b * bt, Ep), jnp.float32),
        grid_spec=pltpu.PrefetchScalarGridSpec(
            num_scalar_prefetch=0,
            grid=(n_b, n_c),                                   # (batch tiles, channel chunks)
            in_specs=[
                pl.BlockSpec((bt, S, Ck), lambda i, c: (i, 0, c)),   # features
                pl.BlockSpec((Ck, Ep), lambda i, c: (c, 0)),         # W^T / S chunk
                pl.BlockSpec((1, Ep), lambda i, c: (0, 0)),          # bias (constant)
            ],
            out_specs=pl.BlockSpec((bt, Ep), lambda i, c: (i, 0)),
            scratch_shapes=[pltpu.VMEM((bt, Ep), jnp.float32)],
        ),
        compiler_params=pltpu.CompilerParams(
            dimension_semantics=("parallel", "arbitrary"),
            vmem_limit_bytes=vmem_limit,
        ),
        cost_estimate=cost,
    )(x, w_t, b)

    return out[:B, :E]            # strip batch-tile / lane padding (tiny output)


# --------------------------- pure-JAX reference ------------------------------
def encoder_cnn_reference(feature_map_nhwc, w_embed, b_embed):
    pooled = jnp.mean(feature_map_nhwc.astype(jnp.float32), axis=(1, 2))
    return jnp.dot(pooled, w_embed.T.astype(jnp.float32),
                   precision=jax.lax.Precision.HIGHEST) + b_embed


# --------------------------------- main ---------------------------------------
if __name__ == "__main__":
    # Small deterministic shapes consistent with the module: the backbone
    # feature map (B, H, W, C) stands in for resnet50's final stage (scaled
    # down), embed_size = 32.
    batch, h, w, channels, embed_size = 2, 8, 8, 256, 32

    key = jax.random.PRNGKey(0)
    k_feat, k_w, k_b = jax.random.split(key, 3)

    # TODO(synk): stand-in for `self.resnet(images)` -- the frozen pretrained
    # ResNet-50 conv backbone is not reproducible offline; its NHWC output
    # feature map is the kernel's input.
    feature_nhwc = jax.random.normal(k_feat, (batch, h, w, channels), jnp.float32)
    w_embed = (jax.random.normal(k_w, (embed_size, channels), jnp.float32)
               * (1.0 / jnp.sqrt(channels)))
    b_embed = jax.random.normal(k_b, (embed_size,), jnp.float32) * 0.01

    # f32 path (module-exact semantics).
    out = jax.block_until_ready(encoder_cnn_forward(feature_nhwc, w_embed, b_embed))
    assert out.shape == (batch, embed_size), out.shape
    assert bool(jnp.all(jnp.isfinite(out)))
    ref = jax.block_until_ready(encoder_cnn_reference(feature_nhwc, w_embed, b_embed))
    assert bool(jnp.allclose(out, ref, atol=1e-3, rtol=1e-3)), (
        float(jnp.max(jnp.abs(out - ref))))

    # bf16 fast path with >1 channel chunk (exercises the accumulator grid axis).
    feat_bf16 = feature_nhwc.astype(jnp.bfloat16)
    out_bf16 = jax.block_until_ready(
        encoder_cnn_forward(feat_bf16, w_embed, b_embed, c_chunk_target=128))
    ref_bf16 = encoder_cnn_reference(
        feat_bf16.astype(jnp.float32),
        w_embed.astype(jnp.bfloat16).astype(jnp.float32), b_embed)
    assert out_bf16.shape == (batch, embed_size), out_bf16.shape
    assert bool(jnp.allclose(out_bf16, ref_bf16, atol=3e-2, rtol=3e-2)), (
        float(jnp.max(jnp.abs(out_bf16 - ref_bf16))))

    print("KERNEL_OK")
</pallas_src>

<mosaic_0001>
module attributes {stable_mosaic.version = 11 : i64} {
  func.func @_encoder_head_kernel(%arg0: i32, %arg1: i32, %arg2: memref<2x64x256xf32, #tpu.memory_space<vmem>>, %arg3: memref<256x128xf32, #tpu.memory_space<vmem>>, %arg4: memref<1x128xf32, #tpu.memory_space<vmem>>, %arg5: memref<2x128xf32, #tpu.memory_space<vmem>>, %arg6: memref<2x128xf32, #tpu.memory_space<vmem>>) attributes {dimension_semantics = [#tpu.dimension_semantics<parallel>, #tpu.dimension_semantics<arbitrary>], iteration_bounds = array<i64: 1, 1>, scalar_prefetch = 0 : i64, scratch_operands = 1 : i64, tpu.core_type = #tpu.core_type<tc>, window_params = [{transform_indices = @transform_0, window_bounds = array<i64: 2, 64, 256>}, {transform_indices = @transform_1, window_bounds = array<i64: 256, 128>}, {pipeline_mode = #tpu.pipeline_mode<synchronous>, transform_indices = @transform_2, window_bounds = array<i64: 1, 128>}, {transform_indices = @transform_3, window_bounds = array<i64: 2, 128>}]} {
    %c0_i32 = arith.constant 0 : i32
    %0 = arith.cmpi eq, %arg1, %c0_i32 : i32
    %1 = arith.extui %0 : i1 to i32
    %c0_i32_0 = arith.constant 0 : i32
    %2 = arith.cmpi ne, %1, %c0_i32_0 : i32
    scf.if %2 {
      %cst_12 = arith.constant 0.000000e+00 : f32
      %13 = vector.broadcast %cst_12 : f32 to vector<2x128xf32>
      %c0_13 = arith.constant 0 : index
      %c0_14 = arith.constant 0 : index
      %14 = vector.load %arg6[%c0_13, %c0_14] : memref<2x128xf32, #tpu.memory_space<vmem>>, vector<2x128xf32>
      tpu.vector_store %arg6[%c0_13, %c0_14], %13 {strides = array<i32>} : memref<2x128xf32, #tpu.memory_space<vmem>>, vector<2x128xf32>,
    } else {
    }
    %c0 = arith.constant 0 : index
    %c0_1 = arith.constant 0 : index
    %c0_2 = arith.constant 0 : index
    %3 = vector.load %arg2[%c0, %c0_1, %c0_2] : memref<2x64x256xf32, #tpu.memory_space<vmem>>, vector<2x64x256xf32>
    %cst = arith.constant dense<0.000000e+00> : vector<2x256xf32>
    %4 = vector.multi_reduction <add>, %3, %cst [1] : vector<2x64x256xf32> to vector<2x256xf32>
    %c0_3 = arith.constant 0 : index
    %c0_4 = arith.constant 0 : index
    %5 = vector.load %arg6[%c0_3, %c0_4] : memref<2x128xf32, #tpu.memory_space<vmem>>, vector<2x128xf32>
    %c0_5 = arith.constant 0 : index
    %c0_6 = arith.constant 0 : index
    %6 = vector.load %arg3[%c0_5, %c0_6] : memref<256x128xf32, #tpu.memory_space<vmem>>, vector<256x128xf32>
    %cst_7 = arith.constant dense<0.000000e+00> : vector<2x128xf32>
    %7 = tpu.matmul %4, %6, %cst_7 {dimension_numbers = #tpu.dot_dimension_numbers<[1], [0], [0], [1], [0, 0, 1, 1], [], []>} : vector<2x256xf32>, vector<256x128xf32>, vector<2x128xf32> -> vector<2x128xf32>
    %8 = arith.addf %5, %7 : vector<2x128xf32>
    %c0_8 = arith.constant 0 : index
    %c0_9 = arith.constant 0 : index
    %9 = vector.load %arg6[%c0_8, %c0_9] : memref<2x128xf32, #tpu.memory_space<vmem>>, vector<2x128xf32>
    tpu.vector_store %arg6[%c0_8, %c0_9], %8 {strides = array<i32>} : memref<2x128xf32, #tpu.memory_space<vmem>>, vector<2x128xf32>,
    %c0_i32_10 = arith.constant 0 : i32
    %10 = arith.cmpi eq, %arg1, %c0_i32_10 : i32
    %11 = arith.extui %10 : i1 to i32
    %c0_i32_11 = arith.constant 0 : i32
    %12 = arith.cmpi ne, %11, %c0_i32_11 : i32
    scf.if %12 {
      %c0_12 = arith.constant 0 : index
      %c0_13 = arith.constant 0 : index
      %13 = vector.load %arg6[%c0_12, %c0_13] : memref<2x128xf32, #tpu.memory_space<vmem>>, vector<2x128xf32>
      %c0_14 = arith.constant 0 : index
      %c0_15 = arith.constant 0 : index
      %14 = vector.load %arg4[%c0_14, %c0_15] : memref<1x128xf32, #tpu.memory_space<vmem>>, vector<1x128xf32>
      %15 = vector.broadcast %14 : vector<1x128xf32> to vector<2x128xf32>
      %16 = arith.addf %13, %15 : vector<2x128xf32>
      %c0_16 = arith.constant 0 : index
      %c0_17 = arith.constant 0 : index
      %17 = vector.load %arg5[%c0_16, %c0_17] : memref<2x128xf32, #tpu.memory_space<vmem>>, vector<2x128xf32>
      tpu.vector_store %arg5[%c0_16, %c0_17], %16 {strides = array<i32>} : memref<2x128xf32, #tpu.memory_space<vmem>>, vector<2x128xf32>,
    } else {
    }
    return
  }
  func.func @transform_0(%arg0: i32, %arg1: i32) -> (i32, i32, i32) {
    %c0_i32 = arith.constant 0 : i32
    %c0_i32_0 = arith.constant 0 : i32
    return %arg0, %c0_i32, %arg1 : i32, i32, i32
  }
  func.func @transform_1(%arg0: i32, %arg1: i32) -> (i32, i32) {
    %c0_i32 = arith.constant 0 : i32
    %c0_i32_0 = arith.constant 0 : i32
    return %arg1, %c0_i32 : i32, i32
  }
  func.func @transform_2(%arg0: i32, %arg1: i32) -> (i32, i32) {
    %c0_i32 = arith.constant 0 : i32
    %c0_i32_0 = arith.constant 0 : i32
    %c0_i32_1 = arith.constant 0 : i32
    return %c0_i32, %c0_i32_0 : i32, i32
  }
  func.func @transform_3(%arg0: i32, %arg1: i32) -> (i32, i32) {
    %c0_i32 = arith.constant 0 : i32
    %c0_i32_0 = arith.constant 0 : i32
    return %arg0, %c0_i32 : i32, i32
  }
}

</mosaic_0001>

<llo_original>
// kernel: tpu_custom_call.1
$region0: #{tpu_custom_call.1}
  #allocation0 [shape = 'u32[]', space=smem, size = 0x4, offset = 0x4, fixed_abs, tag = 'smem constant byte address 0x4 - core index']
  #allocation1 [shape = 'u32[144,128]{1,0:T(1,128)}', space=vmem, size = 0x12000, scoped, tag = 'internal scratch']
  #allocation2 [shape = 'f32[2,128]{1,0:T(2,128)}', space=vmem, size = 0x400, scoped, tag = 'scratch operand']
  %s0 = inlined_call_operand.hbm [shape: f32[2,64,256], index: 0, kind: input, shape index: {}]
  %s1 = inlined_call_operand.hbm [shape: f32[256,128], index: 1, kind: input, shape index: {}]
  %s2 = inlined_call_operand.vmem [shape: f32[1,128], index: 2, kind: input, shape index: {}]
  %s3 = inlined_call_operand.hbm [shape: f32[2,128], index: 3, kind: output, shape index: {}]
  %s4 = sld [smem:[#allocation0]]
  $region38: #{tpu_custom_call.1} parent=0
    _
  %s6 = ssub.s32 1, %s4
  %s7 = scalar_select 0, %s6, %s4
  $region1: #{tpu_custom_call.1} parent=0
    #allocation3 [shape = 'u8[131072]{0}', space=vmem, size = 0x20000, scoped, tag = 'input window, operand 0, single buffered']
    #allocation4 [shape = 's32[1]{0}', space=sflag, size = 0x4, scoped, tag = 'scoped memory for tpu_custom_call.1']
    #allocation5 [shape = 's32[1]{0}', space=sflag, size = 0x4, scoped, tag = 'scoped memory for tpu_custom_call.1']
    #allocation6 [shape = 'u8[131072]{0}', space=vmem, size = 0x20000, scoped, tag = 'input window, operand 1, single buffered']
    #allocation7 [shape = 's32[1]{0}', space=sflag, size = 0x4, scoped, tag = 'scoped memory for tpu_custom_call.1']
    #allocation8 [shape = 'u8[1024]{0}', space=vmem, size = 0x400, scoped, tag = 'output window, operand 0, single buffered']
    %8 = vsyncpa [#allocation4], 0
    %9 = vsyncpa [#allocation7], 0
    %10 = vsyncpa [#allocation5], 0
    // Predicated region
    $region2: #{tpu_custom_call.1} parent=1 // pred_check
      _
    $region3: #{tpu_custom_call.1} parent=1 // pred_check_branch
      %12 = sbr.rel (0) target = $region5
    $region4: #{tpu_custom_call.1} parent=1 // pred_region
      %s14 = ssub.s32 4096, 4096
      %15 = vsyncadd [#allocation4], %s14
      %s16 = sshll.u32 [#allocation3], 4
      %s17 = int_to_ptr.vmem [resolvable:$true] %s16
      %22 = dma.hbm_to_vmem [thread:$0]  %s0, 4096, %s17, [#allocation4], 256, 256, 16
    $region5: #{tpu_custom_call.1} parent=1 // pred_fallthru
      _
    // Predicated region
    $region6: #{tpu_custom_call.1} parent=1 // pred_check
      _
    $region7: #{tpu_custom_call.1} parent=1 // pred_check_branch
      %24 = sbr.rel (0) target = $region9
    $region8: #{tpu_custom_call.1} parent=1 // pred_region
      %s26 = ssub.s32 4096, 4096
      %27 = vsyncadd [#allocation7], %s26
      %s28 = sshll.u32 [#allocation6], 4
      %s29 = int_to_ptr.vmem [resolvable:$true] %s28
      %34 = dma.hbm_to_vmem [thread:$0]  %s1, 4096, %s29, [#allocation7], 128, 128, 8
    $region9: #{tpu_custom_call.1} parent=1 // pred_fallthru
      _
    // Predicated region
    $region10: #{tpu_custom_call.1} parent=1 // pred_check
      _
    $region11: #{tpu_custom_call.1} parent=1 // pred_check_branch
      %36 = sbr.rel (0) target = $region13
    $region12: #{tpu_custom_call.1} parent=1 // pred_region
      _
    $region13: #{tpu_custom_call.1} parent=1 // pred_fallthru
      _
    // Predicated region
    $region14: #{tpu_custom_call.1} parent=1 // pred_check
      _
    $region15: #{tpu_custom_call.1} parent=1 // pred_check_branch
      %38 = sbr.rel (0) target = $region17
    $region16: #{tpu_custom_call.1} parent=1 // pred_region
      %39 = dma.done [#allocation4], 4096
    $region17: #{tpu_custom_call.1} parent=1 // pred_fallthru
      _
    // Predicated region
    $region18: #{tpu_custom_call.1} parent=1 // pred_check
      _
    $region19: #{tpu_custom_call.1} parent=1 // pred_check_branch
      %41 = sbr.rel (0) target = $region21
    $region20: #{tpu_custom_call.1} parent=1 // pred_region
      %42 = dma.done [#allocation7], 4096
    $region21: #{tpu_custom_call.1} parent=1 // pred_fallthru
      _
    %p43 = scmp.eq.s32.totalorder 0, 0
    // Predicated region
    $region22: #{tpu_custom_call.1} parent=1 // pred_check
      %p44 = pneg %p43
    $region23: #{tpu_custom_call.1} parent=1 // pred_check_branch
      %46 = sbr.rel (%p44) target = $region25
    $region24: #{tpu_custom_call.1} parent=1 // pred_region
      %47 = vst [vmem:[#allocation2] sm:$0x3] 0.0
    $region25: #{tpu_custom_call.1} parent=1 // pred_fallthru
      _
    %v48 = vld [vmem:[#allocation3] sm:$0xff]
    %v49 = vld [vmem:[#allocation3 + $0x8] sm:$0xff]
    %v50 = vld [vmem:[#allocation3 + $0x10] sm:$0xff]
    %v51 = vld [vmem:[#allocation3 + $0x18] sm:$0xff]
    %v52 = vld [vmem:[#allocation3 + $0x20] sm:$0xff]
    %v53 = vld [vmem:[#allocation3 + $0x28] sm:$0xff]
    %v54 = vld [vmem:[#allocation3 + $0x30] sm:$0xff]
    %v55 = vld [vmem:[#allocation3 + $0x38] sm:$0xff]
    %v56 = vld [vmem:[#allocation3 + $0x40] sm:$0xff]
    %v57 = vld [vmem:[#allocation3 + $0x48] sm:$0xff]
    %v58 = vld [vmem:[#allocation3 + $0x50] sm:$0xff]
    %v59 = vld [vmem:[#allocation3 + $0x58] sm:$0xff]
    %v60 = vld [vmem:[#allocation3 + $0x60] sm:$0xff]
    %v61 = vld [vmem:[#allocation3 + $0x68] sm:$0xff]
    %v62 = vld [vmem:[#allocation3 + $0x70] sm:$0xff]
    %v63 = vld [vmem:[#allocation3 + $0x78] sm:$0xff]
    %v64 = vld [vmem:[#allocation3 + $0x80] sm:$0xff]
    %v65 = vld [vmem:[#allocation3 + $0x88] sm:$0xff]
    %v66 = vld [vmem:[#allocation3 + $0x90] sm:$0xff]
    %v67 = vld [vmem:[#allocation3 + $0x98] sm:$0xff]
    %v68 = vld [vmem:[#allocation3 + $0xa0] sm:$0xff]
    %v69 = vld [vmem:[#allocation3 + $0xa8] sm:$0xff]
    %v70 = vld [vmem:[#allocation3 + $0xb0] sm:$0xff]
    %v71 = vld [vmem:[#allocation3 + $0xb8] sm:$0xff]
    %v72 = vld [vmem:[#allocation3 + $0xc0] sm:$0xff]
    %v73 = vld [vmem:[#allocation3 + $0xc8] sm:$0xff]
    %v74 = vld [vmem:[#allocation3 + $0xd0] sm:$0xff]
    %v75 = vld [vmem:[#allocation3 + $0xd8] sm:$0xff]
    %v76 = vld [vmem:[#allocation3 + $0xe0] sm:$0xff]
    %v77 = vld [vmem:[#allocation3 + $0xe8] sm:$0xff]
    %v78 = vld [vmem:[#allocation3 + $0xf0] sm:$0xff]
    %v79 = vld [vmem:[#allocation3 + $0xf8] sm:$0xff]
    %v80 = vadd.f32 %v48, %v50
    %v81 = vadd.f32 %v80, %v52
    %v82 = vadd.f32 %v81, %v54
    %v83 = vadd.f32 %v82, %v56
    %v84 = vadd.f32 %v83, %v58
    %v85 = vadd.f32 %v84, %v60
    %v86 = vadd.f32 %v85, %v62
    %v87 = vrot.slane %v86, 4
    %v88 = vadd.f32 %v86, %v87
    %v89 = vrot.slane %v88, 2
    %v90 = vadd.f32 %v88, %v89
    %v91 = vrot.slane %v90, 1
    %v92 = vadd.f32 %v90, %v91
    %v93 = vadd.f32 %v49, %v51
    %v94 = vadd.f32 %v93, %v53
    %v95 = vadd.f32 %v94, %v55
    %v96 = vadd.f32 %v95, %v57
    %v97 = vadd.f32 %v96, %v59
    %v98 = vadd.f32 %v97, %v61
    %v99 = vadd.f32 %v98, %v63
    %v100 = vrot.slane %v99, 4
    %v101 = vadd.f32 %v99, %v100
    %v102 = vrot.slane %v101, 2
    %v103 = vadd.f32 %v101, %v102
    %v104 = vrot.slane %v103, 1
    %v105 = vadd.f32 %v103, %v104
    %v106 = vadd.f32 %v64, %v66
    %v107 = vadd.f32 %v106, %v68
    %v108 = vadd.f32 %v107, %v70
    %v109 = vadd.f32 %v108, %v72
    %v110 = vadd.f32 %v109, %v74
    %v111 = vadd.f32 %v110, %v76
    %v112 = vadd.f32 %v111, %v78
    %v113 = vrot.slane %v112, 4
    %v114 = vadd.f32 %v112, %v113
    %v115 = vrot.slane %v114, 2
    %v116 = vadd.f32 %v114, %v115
    %v117 = vrot.slane %v116, 1
    %v118 = vadd.f32 %v116, %v117
    %v119 = vadd.f32 %v65, %v67
    %v120 = vadd.f32 %v119, %v69
    %v121 = vadd.f32 %v120, %v71
    %v122 = vadd.f32 %v121, %v73
    %v123 = vadd.f32 %v122, %v75
    %v124 = vadd.f32 %v123, %v77
    %v125 = vadd.f32 %v124, %v79
    %v126 = vrot.slane %v125, 4
    %v127 = vadd.f32 %v125, %v126
    %v128 = vrot.slane %v127, 2
    %v129 = vadd.f32 %v127, %v128
    %v130 = vrot.slane %v129, 1
    %v131 = vadd.f32 %v129, %v130
    %v132 = vld [vmem:[#allocation2] sm:$0x3]
    %v133 = vld [vmem:[#allocation6] sm:$0xff]
    %v134 = vld [vmem:[#allocation6 + $0x8] sm:$0xff]
    %v135 = vld [vmem:[#allocation6 + $0x10] sm:$0xff]
    %v136 = vld [vmem:[#allocation6 + $0x18] sm:$0xff]
    %v137 = vld [vmem:[#allocation6 + $0x20] sm:$0xff]
    %v138 = vld [vmem:[#allocation6 + $0x28] sm:$0xff]
    %v139 = vld [vmem:[#allocation6 + $0x30] sm:$0xff]
    %v140 = vld [vmem:[#allocation6 + $0x38] sm:$0xff]
    %v141 = vld [vmem:[#allocation6 + $0x40] sm:$0xff]
    %v142 = vld [vmem:[#allocation6 + $0x48] sm:$0xff]
    %v143 = vld [vmem:[#allocation6 + $0x50] sm:$0xff]
    %v144 = vld [vmem:[#allocation6 + $0x58] sm:$0xff]
    %v145 = vld [vmem:[#allocation6 + $0x60] sm:$0xff]
    %v146 = vld [vmem:[#allocation6 + $0x68] sm:$0xff]
    %v147 = vld [vmem:[#allocation6 + $0x70] sm:$0xff]
    %v148 = vld [vmem:[#allocation6 + $0x78] sm:$0xff]
    %v149 = vld [vmem:[#allocation6 + $0x80] sm:$0xff]
    %v150 = vld [vmem:[#allocation6 + $0x88] sm:$0xff]
    %v151 = vld [vmem:[#allocation6 + $0x90] sm:$0xff]
    %v152 = vld [vmem:[#allocation6 + $0x98] sm:$0xff]
    %v153 = vld [vmem:[#allocation6 + $0xa0] sm:$0xff]
    %v154 = vld [vmem:[#allocation6 + $0xa8] sm:$0xff]
    %v155 = vld [vmem:[#allocation6 + $0xb0] sm:$0xff]
    %v156 = vld [vmem:[#allocation6 + $0xb8] sm:$0xff]
    %v157 = vld [vmem:[#allocation6 + $0xc0] sm:$0xff]
    %v158 = vld [vmem:[#allocation6 + $0xc8] sm:$0xff]
    %v159 = vld [vmem:[#allocation6 + $0xd0] sm:$0xff]
    %v160 = vld [vmem:[#allocation6 + $0xd8] sm:$0xff]
    %v161 = vld [vmem:[#allocation6 + $0xe0] sm:$0xff]
    %v162 = vld [vmem:[#allocation6 + $0xe8] sm:$0xff]
    %v163 = vld [vmem:[#allocation6 + $0xf0] sm:$0xff]
    %v164 = vld [vmem:[#allocation6 + $0xf8] sm:$0xff]
    %vm169 = vcmask 1041409
    %v170 = vsel %vm169, %v118, %v92
    %v171 = vsel %vm169, %v131, %v105
    %174 = vmatprep.subr.mxu0 0.0
    %175 = vmatpush1.msra.mxu0 %v133
    %176 = vmatprep.subr.mxu0 0.0
    %177 = vmatpush1.msra.mxu0 %v134
    %178 = vmatprep.subr.mxu0 0.0
    %179 = vmatpush1.msra.mxu0 %v135
    %180 = vmatprep.subr.mxu0 0.0
    %181 = vmatpush1.msra.mxu0 %v136
    %182 = vmatprep.subr.mxu0 0.0
    %183 = vmatpush1.msra.mxu0 %v137
    %184 = vmatprep.subr.mxu0 0.0
    %185 = vmatpush1.msra.mxu0 %v138
    %186 = vmatprep.subr.mxu0 0.0
    %187 = vmatpush1.msra.mxu0 %v139
    %188 = vmatprep.subr.mxu0 0.0
    %189 = vmatpush1.msra.mxu0 %v140
    %190 = vmatprep.subr.mxu0 0.0
    %191 = vmatpush1.msra.mxu0 %v141
    %192 = vmatprep.subr.mxu0 0.0
    %193 = vmatpush1.msra.mxu0 %v142
    %194 = vmatprep.subr.mxu0 0.0
    %195 = vmatpush1.msra.mxu0 %v143
    %196 = vmatprep.subr.mxu0 0.0
    %197 = vmatpush1.msra.mxu0 %v144
    %198 = vmatprep.subr.mxu0 0.0
    %199 = vmatpush1.msra.mxu0 %v145
    %200 = vmatprep.subr.mxu0 0.0
    %201 = vmatpush1.msra.mxu0 %v146
    %202 = vmatprep.subr.mxu0 0.0
    %203 = vmatpush1.msra.mxu0 %v147
    %204 = vmatprep.subr.mxu0 0.0
    %205 = vmatpush1.msra.mxu0 %v148
    %206 = vmatprep.subr.mxu0 0.0
    %207 = vmatpush1.msra.mxu0 %v149
    %208 = vmatprep.subr.mxu0 0.0
    %209 = vmatpush1.msra.mxu0 %v150
    %210 = vmatprep.subr.mxu0 0.0
    %211 = vmatpush1.msra.mxu0 %v151
    %212 = vmatprep.subr.mxu0 0.0
    %213 = vmatpush1.msra.mxu0 %v152
    %214 = vmatprep.subr.mxu0 0.0
    %215 = vmatpush1.msra.mxu0 %v153
    %216 = vmatprep.subr.mxu0 0.0
    %217 = vmatpush1.msra.mxu0 %v154
    %218 = vmatprep.subr.mxu0 0.0
    %219 = vmatpush1.msra.mxu0 %v155
    %220 = vmatprep.subr.mxu0 0.0
    %221 = vmatpush1.msra.mxu0 %v156
    %222 = vmatprep.subr.mxu0 0.0
    %223 = vmatpush1.msra.mxu0 %v157
    %224 = vmatprep.subr.mxu0 0.0
    %225 = vmatpush1.msra.mxu0 %v158
    %226 = vmatprep.subr.mxu0 0.0
    %227 = vmatpush1.msra.mxu0 %v159
    %228 = vmatprep.subr.mxu0 0.0
    %229 = vmatpush1.msra.mxu0 %v160
    %230 = vmatprep.subr.mxu0 0.0
    %231 = vmatpush1.msra.mxu0 %v161
    %232 = vmatprep.subr.mxu0 0.0
    %233 = vmatpush1.msra.mxu0 %v162
    %234 = vmatprep.subr.mxu0 0.0
    %235 = vmatpush1.msra.mxu0 %v163
    %236 = vmatprep.subr.mxu0 0.0
    %237 = vmatpush1.msra.mxu0 %v164
    %238 = vmatprep.mubr.f32.mxu0 %v171
    %239 = vmatmul.mubr.f32.gmra.mrb[0].mxu0 %v170
    %v240 = vpop.f32.mrb[0].mxu0
    %v241 = vadd.f32 0.0, %v240
    %v242 = vpop.f32.mrb[0].mxu0
    %243 = vdwg.mxu0
    %v244 = vadd.f32 %v132, %v241
    %245 = vst [vmem:[#allocation2] sm:$0x3] %v244
    // Predicated region
    $region26: #{tpu_custom_call.1} parent=1 // pred_check
      %p246 = pneg %p43
    $region27: #{tpu_custom_call.1} parent=1 // pred_check_branch
      %248 = sbr.rel (%p246) target = $region29
    $region28: #{tpu_custom_call.1} parent=1 // pred_region
      %v249 = vld [vmem:[#allocation2] sm:$0x3]
      %v250 = vld [vmem:[%s2] sm:$0x1]
      %v252 = vlaneseq
      %v253 = vshrl.u32 %v252, 7
      %v254 = vsub.s32 0, %v253
      %v255 = vrot.slane %v250, %v254
      %v257 = vadd.f32 %v249, %v255
      %258 = vst [vmem:[#allocation8] sm:$0x3] %v257
    $region29: #{tpu_custom_call.1} parent=1 // pred_fallthru
      _
    // Predicated region
    $region30: #{tpu_custom_call.1} parent=1 // pred_check
      _
    $region31: #{tpu_custom_call.1} parent=1 // pred_check_branch
      %260 = sbr.rel (0) target = $region33
    $region32: #{tpu_custom_call.1} parent=1 // pred_region
      %s262 = ssub.s32 32, 32
      %263 = vsyncadd [#allocation5], %s262
      %s265 = sshll.u32 [#allocation8], 4
      %s266 = int_to_ptr.vmem [resolvable:$true] %s265
      %268 = dma.vmem_to_hbm [thread:$0]  %s266, 32, %s3, [#allocation5]
    $region33: #{tpu_custom_call.1} parent=1 // pred_fallthru
      _
    // Predicated region
    $region34: #{tpu_custom_call.1} parent=1 // pred_check
      _
    $region35: #{tpu_custom_call.1} parent=1 // pred_check_branch
      %270 = sbr.rel (0) target = $region37
    $region36: #{tpu_custom_call.1} parent=1 // pred_region
      %271 = dma.done [#allocation5], 32
    $region37: #{tpu_custom_call.1} parent=1 // pred_fallthru
      _
    %272 = vsyncpa [#allocation4], 1
    %273 = vsyncpa [#allocation7], 1
    %274 = vsyncpa [#allocation5], 1

</llo_original>
